<compile_context>
chip_gen: v6e
topology: v6e:2x2x1
jax: 0.10.0
libtpu: 0.0.40
codegen_flags: <defaults>
</compile_context>

<pallas_src>
import jax
import jax.numpy as jnp
from jax import lax
from jax.experimental import pallas as pl
from jax.experimental.pallas import tpu as pltpu


def conv_bias_relu_kernel(cols_ref, w_ref, b_ref, o_ref):
    # cols_ref: (K, M)   w_ref: (OC, K)   b_ref: (OC, 1)   o_ref: (OC, M)
    acc = jnp.dot(w_ref[...], cols_ref[...], preferred_element_type=jnp.float32)
    acc = acc + b_ref[...]            # (OC, 1) lane-broadcast over M
    o_ref[...] = jnp.maximum(acc, 0.0).astype(o_ref.dtype)


def conv_block_forward(x_nchw, w_oihw, bias):
    """ConvBlock.forward: relu(conv2d(dropout_p0(x), W, b)), valid padding, stride 1."""
    N, C, H, W = x_nchw.shape
    OC, _, KH, KW = w_oihw.shape
    OH, OW = H - KH + 1, W - KW + 1
    K = C * KH * KW
    M = N * OH * OW

    # ---- wrapper-side im2col (layout glue in plain JAX) ----
    # K-index ordering = c*(KH*KW) + kh*KW + kw, which matches a plain
    # w_oihw.reshape(OC, C*KH*KW) flatten of the PyTorch OIHW weight.
    taps = [
        x_nchw[:, :, dh:dh + OH, dw:dw + OW]              # (N, C, OH, OW)
        for dh in range(KH) for dw in range(KW)
    ]
    cols = jnp.stack(taps, axis=2)                        # (N, C, KH*KW, OH, OW)
    cols = cols.transpose(1, 2, 0, 3, 4).reshape(K, M)    # (K, N*OH*OW)

    w2 = w_oihw.reshape(OC, K)                            # (OC, K)
    b2 = bias.reshape(OC, 1)                              # (OC, 1)

    out = pl.pallas_call(
        conv_bias_relu_kernel,
        out_shape=jax.ShapeDtypeStruct((OC, M), x_nchw.dtype),
        grid=(1,),
        in_specs=[
            pl.BlockSpec((K, M), lambda i: (0, 0)),
            pl.BlockSpec((OC, K), lambda i: (0, 0)),
            pl.BlockSpec((OC, 1), lambda i: (0, 0)),
        ],
        out_specs=pl.BlockSpec((OC, M), lambda i: (0, 0)),
        compiler_params=pltpu.CompilerParams(
            dimension_semantics=("arbitrary",),
        ),
    )(cols, w2, b2)                                       # (OC, N*OH*OW)

    # (OC, N, OH, OW) -> (N, OC, OH, OW): swap of two tiny outer axes only.
    return out.reshape(OC, N, OH, OW).transpose(1, 0, 2, 3)


if __name__ == "__main__":
    # ConvBlock(inchan=4, outchan=8, kernel=[3, 2], dropout=0.0)
    inchan, outchan = 4, 8
    KH, KW = 3, 2
    N, H, W = 2, 16, 16

    key = jax.random.PRNGKey(0)
    kx, kw, kb = jax.random.split(key, 3)

    x = jax.random.normal(kx, (N, inchan, H, W), dtype=jnp.float32)
    # Deterministic synthetic params (PyTorch shapes: weight OIHW, bias (OC,)).
    w = jax.random.normal(kw, (outchan, inchan, KH, KW), dtype=jnp.float32) * 0.1
    b = jax.random.normal(kb, (outchan,), dtype=jnp.float32) * 0.1

    out = conv_block_forward(x, w, b)
    out = jax.block_until_ready(out)

    # Sanity check against XLA's conv (NCHW / OIHW, valid padding) + bias + relu.
    ref = lax.conv_general_dilated(
        x, w, window_strides=(1, 1), padding="VALID",
        dimension_numbers=("NCHW", "OIHW", "NCHW"),
    ) + b[None, :, None, None]
    ref = jnp.maximum(ref, 0.0)

    assert out.shape == (N, outchan, H - KH + 1, W - KW + 1)
    assert jnp.allclose(out, ref, atol=1e-4, rtol=1e-4)

    print("KERNEL_OK")
</pallas_src>

<mosaic_0001>
module attributes {stable_mosaic.version = 11 : i64} {
  func.func @conv_bias_relu_kernel(%arg0: i32, %arg1: memref<24x420xf32, #tpu.memory_space<vmem>>, %arg2: memref<8x24xf32, #tpu.memory_space<vmem>>, %arg3: memref<8x1xf32, #tpu.memory_space<vmem>>, %arg4: memref<8x420xf32, #tpu.memory_space<vmem>>) attributes {dimension_semantics = [#tpu.dimension_semantics<arbitrary>], iteration_bounds = array<i64: 1>, scalar_prefetch = 0 : i64, scratch_operands = 0 : i64, tpu.core_type = #tpu.core_type<tc>, window_params = [{pipeline_mode = #tpu.pipeline_mode<synchronous>, transform_indices = @transform_0, window_bounds = array<i64: 24, 420>}, {pipeline_mode = #tpu.pipeline_mode<synchronous>, transform_indices = @transform_1, window_bounds = array<i64: 8, 24>}, {pipeline_mode = #tpu.pipeline_mode<synchronous>, transform_indices = @transform_2, window_bounds = array<i64: 8, 1>}, {pipeline_mode = #tpu.pipeline_mode<synchronous>, transform_indices = @transform_3, window_bounds = array<i64: 8, 420>}]} {
    %c0 = arith.constant 0 : index
    %c0_0 = arith.constant 0 : index
    %0 = vector.load %arg2[%c0, %c0_0] : memref<8x24xf32, #tpu.memory_space<vmem>>, vector<8x24xf32>
    %c0_1 = arith.constant 0 : index
    %c0_2 = arith.constant 0 : index
    %1 = vector.load %arg1[%c0_1, %c0_2] : memref<24x420xf32, #tpu.memory_space<vmem>>, vector<24x420xf32>
    %cst = arith.constant dense<0.000000e+00> : vector<8x420xf32>
    %2 = tpu.matmul %0, %1, %cst {dimension_numbers = #tpu.dot_dimension_numbers<[1], [0], [0], [1], [0, 0, 1, 1], [], []>} : vector<8x24xf32>, vector<24x420xf32>, vector<8x420xf32> -> vector<8x420xf32>
    %c0_3 = arith.constant 0 : index
    %c0_4 = arith.constant 0 : index
    %3 = vector.load %arg3[%c0_3, %c0_4] : memref<8x1xf32, #tpu.memory_space<vmem>>, vector<8x1xf32>
    %4 = vector.broadcast %3 : vector<8x1xf32> to vector<8x420xf32>
    %5 = arith.addf %2, %4 : vector<8x420xf32>
    %cst_5 = arith.constant 0.000000e+00 : f32
    %6 = vector.broadcast %cst_5 : f32 to vector<8x420xf32>
    %7 = arith.maximumf %5, %6 : vector<8x420xf32>
    %c0_6 = arith.constant 0 : index
    %c0_7 = arith.constant 0 : index
    %8 = vector.load %arg4[%c0_6, %c0_7] : memref<8x420xf32, #tpu.memory_space<vmem>>, vector<8x420xf32>
    tpu.vector_store %arg4[%c0_6, %c0_7], %7 {strides = array<i32>} : memref<8x420xf32, #tpu.memory_space<vmem>>, vector<8x420xf32>,
    return
  }
  func.func @transform_0(%arg0: i32) -> (i32, i32) {
    %c0_i32 = arith.constant 0 : i32
    %c0_i32_0 = arith.constant 0 : i32
    %c0_i32_1 = arith.constant 0 : i32
    return %c0_i32, %c0_i32_0 : i32, i32
  }
  func.func @transform_1(%arg0: i32) -> (i32, i32) {
    %c0_i32 = arith.constant 0 : i32
    %c0_i32_0 = arith.constant 0 : i32
    %c0_i32_1 = arith.constant 0 : i32
    return %c0_i32, %c0_i32_0 : i32, i32
  }
  func.func @transform_2(%arg0: i32) -> (i32, i32) {
    %c0_i32 = arith.constant 0 : i32
    %c0_i32_0 = arith.constant 0 : i32
    %c0_i32_1 = arith.constant 0 : i32
    return %c0_i32, %c0_i32_0 : i32, i32
  }
  func.func @transform_3(%arg0: i32) -> (i32, i32) {
    %c0_i32 = arith.constant 0 : i32
    %c0_i32_0 = arith.constant 0 : i32
    %c0_i32_1 = arith.constant 0 : i32
    return %c0_i32, %c0_i32_0 : i32, i32
  }
}

</mosaic_0001>

<llo_original>
// kernel: tpu_custom_call.1
$region0: #{tpu_custom_call.1}
  #allocation0 [shape = 'u32[]', space=smem, size = 0x4, offset = 0x4, fixed_abs, tag = 'smem constant byte address 0x4 - core index']
  #allocation1 [shape = 'u32[144,128]{1,0:T(1,128)}', space=vmem, size = 0x12000, scoped, tag = 'internal scratch']
  %s0 = inlined_call_operand.hbm [shape: f32[24,420], index: 0, kind: input, shape index: {}]
  %s1 = inlined_call_operand.vmem [shape: f32[8,24], index: 1, kind: input, shape index: {}]
  %s2 = inlined_call_operand.vmem [shape: f32[8,1], index: 2, kind: input, shape index: {}]
  %s3 = inlined_call_operand.hbm [shape: f32[8,420], index: 3, kind: output, shape index: {}]
  %s4 = sld [smem:[#allocation0]]
  $region26: #{tpu_custom_call.1} parent=0
    _
  %s6 = ssub.s32 1, %s4
  %s7 = scalar_select 0, %s6, %s4
  $region1: #{tpu_custom_call.1} parent=0
    #allocation2 [shape = 'u8[49152]{0}', space=vmem, size = 0xc000, scoped, tag = 'input window, operand 0, single buffered']
    #allocation3 [shape = 's32[1]{0}', space=sflag, size = 0x4, scoped, tag = 'scoped memory for tpu_custom_call.1']
    #allocation4 [shape = 's32[1]{0}', space=sflag, size = 0x4, scoped, tag = 'scoped memory for tpu_custom_call.1']
    #allocation5 [shape = 'u8[16384]{0}', space=vmem, size = 0x4000, scoped, tag = 'output window, operand 0, single buffered']
    %8 = vsyncpa [#allocation3], 0
    %9 = vsyncpa [#allocation4], 0
    // Predicated region
    $region2: #{tpu_custom_call.1} parent=1 // pred_check
      _
    $region3: #{tpu_custom_call.1} parent=1 // pred_check_branch
      %11 = sbr.rel (0) target = $region5
    $region4: #{tpu_custom_call.1} parent=1 // pred_region
      %s13 = ssub.s32 1536, 1536
      %14 = vsyncadd [#allocation3], %s13
      %s15 = sshll.u32 [#allocation2], 4
      %s16 = int_to_ptr.vmem [resolvable:$true] %s15
      %21 = dma.hbm_to_vmem [thread:$0]  %s0, 1536, %s16, [#allocation3], 512, 512, 32
    $region5: #{tpu_custom_call.1} parent=1 // pred_fallthru
      _
    // Predicated region
    $region6: #{tpu_custom_call.1} parent=1 // pred_check
      _
    $region7: #{tpu_custom_call.1} parent=1 // pred_check_branch
      %23 = sbr.rel (0) target = $region9
    $region8: #{tpu_custom_call.1} parent=1 // pred_region
      _
    $region9: #{tpu_custom_call.1} parent=1 // pred_fallthru
      _
    // Predicated region
    $region10: #{tpu_custom_call.1} parent=1 // pred_check
      _
    $region11: #{tpu_custom_call.1} parent=1 // pred_check_branch
      %25 = sbr.rel (0) target = $region13
    $region12: #{tpu_custom_call.1} parent=1 // pred_region
      _
    $region13: #{tpu_custom_call.1} parent=1 // pred_fallthru
      _
    // Predicated region
    $region14: #{tpu_custom_call.1} parent=1 // pred_check
      _
    $region15: #{tpu_custom_call.1} parent=1 // pred_check_branch
      %27 = sbr.rel (0) target = $region17
    $region16: #{tpu_custom_call.1} parent=1 // pred_region
      %28 = dma.done [#allocation3], 1536
    $region17: #{tpu_custom_call.1} parent=1 // pred_fallthru
      _
    %v29 = vld [vmem:[%s1] sm:$0xff]
    %v30 = vld [vmem:[#allocation2] sm:$0xff]
    %v31 = vld [vmem:[#allocation2 + $0x8] sm:$0xff]
    %v32 = vld [vmem:[#allocation2 + $0x10] sm:$0xff]
    %v33 = vld [vmem:[#allocation2 + $0x18] sm:$0xff]
    %v34 = vld [vmem:[#allocation2 + $0x20] sm:$0xff]
    %v35 = vld [vmem:[#allocation2 + $0x28] sm:$0xff]
    %v36 = vld [vmem:[#allocation2 + $0x30] sm:$0xff]
    %v37 = vld [vmem:[#allocation2 + $0x38] sm:$0xff]
    %v38 = vld [vmem:[#allocation2 + $0x40] sm:$0xff]
    %v39 = vld [vmem:[#allocation2 + $0x48] sm:$0xff]
    %v40 = vld [vmem:[#allocation2 + $0x50] sm:$0xff]
    %v41 = vld [vmem:[#allocation2 + $0x58] sm:$0xff]
    %v42 = vld [vmem:[%s2] sm:$0xff]
    %44 = vset.pattern.permute.xlu0 0
    %45 = vperm.xlu0 %44, %v42
    %v46 = vpop.permute.xlu0 %45
    %vm48 = vcmask 195584
    %v50 = vsel %vm48, %v29, 0
    %52 = vmatprep.subr.mxu0 0.0
    %53 = vmatpush1.msra.mxu0 0.0
    %54 = vmatprep.subr.mxu0 0.0
    %55 = vmatpush1.msra.mxu0 0.0
    %56 = vmatprep.subr.mxu0 0.0
    %57 = vmatpush1.msra.mxu0 0.0
    %58 = vmatprep.subr.mxu0 0.0
    %59 = vmatpush1.msra.mxu0 0.0
    %60 = vmatprep.subr.mxu0 0.0
    %61 = vmatpush1.msra.mxu0 0.0
    %62 = vmatprep.subr.mxu0 0.0
    %63 = vmatpush1.msra.mxu0 0.0
    %64 = vmatprep.subr.mxu0 0.0
    %65 = vmatpush1.msra.mxu0 0.0
    %66 = vmatprep.subr.mxu0 0.0
    %67 = vmatpush1.msra.mxu0 0.0
    %68 = vmatprep.subr.mxu0 0.0
    %69 = vmatpush1.msra.mxu0 0.0
    %70 = vmatprep.subr.mxu0 0.0
    %71 = vmatpush1.msra.mxu0 0.0
    %72 = vmatprep.subr.mxu0 0.0
    %73 = vmatpush1.msra.mxu0 0.0
    %74 = vmatprep.subr.mxu0 0.0
    %75 = vmatpush1.msra.mxu0 0.0
    %76 = vmatprep.subr.mxu0 0.0
    %77 = vmatpush1.msra.mxu0 0.0
    %78 = vmatprep.subr.mxu0 %v39
    %79 = vmatpush1.msra.mxu0 %v38
    %80 = vmatprep.subr.mxu0 %v35
    %81 = vmatpush1.msra.mxu0 %v34
    %82 = vmatprep.subr.mxu0 %v31
    %83 = vmatpush1.msra.mxu0 %v30
    %84 = vmatprep.subr.mxu0 0.0
    %85 = vmatpush2.msra.mxu0 0.0
    %86 = vmatprep.subr.mxu0 0.0
    %87 = vmatpush2.msra.mxu0 0.0
    %88 = vmatprep.subr.mxu0 0.0
    %89 = vmatpush2.msra.mxu0 0.0
    %90 = vmatprep.subr.mxu0 0.0
    %91 = vmatpush2.msra.mxu0 0.0
    %92 = vmatprep.subr.mxu0 0.0
    %93 = vmatpush2.msra.mxu0 0.0
    %94 = vmatprep.subr.mxu0 0.0
    %95 = vmatpush2.msra.mxu0 0.0
    %96 = vmatprep.subr.mxu0 0.0
    %97 = vmatpush2.msra.mxu0 0.0
    %98 = vmatprep.subr.mxu0 0.0
    %99 = vmatpush2.msra.mxu0 0.0
    %100 = vmatprep.subr.mxu0 0.0
    %101 = vmatpush2.msra.mxu0 0.0
    %102 = vmatprep.subr.mxu0 0.0
    %103 = vmatpush2.msra.mxu0 0.0
    %104 = vmatprep.subr.mxu0 0.0
    %105 = vmatpush2.msra.mxu0 0.0
    %106 = vmatprep.subr.mxu0 0.0
    %107 = vmatpush2.msra.mxu0 0.0
    %108 = vmatprep.subr.mxu0 0.0
    %109 = vmatpush2.msra.mxu0 0.0
    %110 = vmatprep.subr.mxu0 0.0
    %111 = vmatpush2.msra.mxu0 0.0
    %112 = vmatprep.subr.mxu0 0.0
    %113 = vmatpush2.msra.mxu0 0.0
    %114 = vmatprep.subr.mxu0 0.0
    %115 = vmatpush2.msra.mxu0 0.0
    %116 = vmatprep.mubr.f32.mxu0 0.0
    %117 = vmatmul.mubr.f32.gmra.mxu0 %v50
    %v118 = vpop.f32.mrf.mxu0
    %v119 = vadd.f32 %v46, %v118
    %v120 = vpop.f32.mrf.mxu0
    %v121 = vadd.f32 %v46, %v120
    %122 = vdwg.mxu0
    %123 = vmatprep.subr.mxu0 0.0
    %124 = vmatpush1.msra.mxu0 0.0
    %125 = vmatprep.subr.mxu0 0.0
    %126 = vmatpush1.msra.mxu0 0.0
    %127 = vmatprep.subr.mxu0 0.0
    %128 = vmatpush1.msra.mxu0 0.0
    %129 = vmatprep.subr.mxu0 0.0
    %130 = vmatpush1.msra.mxu0 0.0
    %131 = vmatprep.subr.mxu0 0.0
    %132 = vmatpush1.msra.mxu0 0.0
    %133 = vmatprep.subr.mxu0 0.0
    %134 = vmatpush1.msra.mxu0 0.0
    %135 = vmatprep.subr.mxu0 0.0
    %136 = vmatpush1.msra.mxu0 0.0
    %137 = vmatprep.subr.mxu0 0.0
    %138 = vmatpush1.msra.mxu0 0.0
    %139 = vmatprep.subr.mxu0 0.0
    %140 = vmatpush1.msra.mxu0 0.0
    %141 = vmatprep.subr.mxu0 0.0
    %142 = vmatpush1.msra.mxu0 0.0
    %143 = vmatprep.subr.mxu0 0.0
    %144 = vmatpush1.msra.mxu0 0.0
    %145 = vmatprep.subr.mxu0 0.0
    %146 = vmatpush1.msra.mxu0 0.0
    %147 = vmatprep.subr.mxu0 0.0
    %148 = vmatpush1.msra.mxu0 0.0
    %149 = vmatprep.subr.mxu0 %v41
    %150 = vmatpush1.msra.mxu0 %v40
    %151 = vmatprep.subr.mxu0 %v37
    %152 = vmatpush1.msra.mxu0 %v36
    %153 = vmatprep.subr.mxu0 %v33
    %154 = vmatpush1.msra.mxu0 %v32
    %155 = vmatprep.subr.mxu0 0.0
    %156 = vmatpush2.msra.mxu0 0.0
    %157 = vmatprep.subr.mxu0 0.0
    %158 = vmatpush2.msra.mxu0 0.0
    %159 = vmatprep.subr.mxu0 0.0
    %160 = vmatpush2.msra.mxu0 0.0
    %161 = vmatprep.subr.mxu0 0.0
    %162 = vmatpush2.msra.mxu0 0.0
    %163 = vmatprep.subr.mxu0 0.0
    %164 = vmatpush2.msra.mxu0 0.0
    %165 = vmatprep.subr.mxu0 0.0
    %166 = vmatpush2.msra.mxu0 0.0
    %167 = vmatprep.subr.mxu0 0.0
    %168 = vmatpush2.msra.mxu0 0.0
    %169 = vmatprep.subr.mxu0 0.0
    %170 = vmatpush2.msra.mxu0 0.0
    %171 = vmatprep.subr.mxu0 0.0
    %172 = vmatpush2.msra.mxu0 0.0
    %173 = vmatprep.subr.mxu0 0.0
    %174 = vmatpush2.msra.mxu0 0.0
    %175 = vmatprep.subr.mxu0 0.0
    %176 = vmatpush2.msra.mxu0 0.0
    %177 = vmatprep.subr.mxu0 0.0
    %178 = vmatpush2.msra.mxu0 0.0
    %179 = vmatprep.subr.mxu0 0.0
    %180 = vmatpush2.msra.mxu0 0.0
    %181 = vmatprep.subr.mxu0 0.0
    %182 = vmatpush2.msra.mxu0 0.0
    %183 = vmatprep.subr.mxu0 0.0
    %184 = vmatpush2.msra.mxu0 0.0
    %185 = vmatprep.subr.mxu0 0.0
    %186 = vmatpush2.msra.mxu0 0.0
    %187 = vmatprep.mubr.f32.mxu0 0.0
    %188 = vmatmul.mubr.f32.gmra.mxu0 %v50
    %v189 = vpop.f32.mrf.mxu0
    %v190 = vadd.f32 %v46, %v189
    %v191 = vpop.f32.mrf.mxu0
    %v192 = vadd.f32 %v46, %v191
    %193 = vdwg.mxu0
    %v194 = vmax.f32 %v119, 0.0
    %v195 = vmax.f32 %v121, 0.0
    %v196 = vmax.f32 %v190, 0.0
    %v197 = vmax.f32 %v192, 0.0
    %198 = vst [vmem:[#allocation5] sm:$0xff] %v194
    %199 = vst [vmem:[#allocation5 + $0x8] sm:$0xff] %v195
    %200 = vst [vmem:[#allocation5 + $0x10] sm:$0xff] %v196
    %vm201 = vcmask 293888
    %202 = vst.msk [vmem:[#allocation5 + $0x18] sm:$0xff] %vm201, %v197
    // Predicated region
    $region18: #{tpu_custom_call.1} parent=1 // pred_check
      _
    $region19: #{tpu_custom_call.1} parent=1 // pred_check_branch
      %204 = sbr.rel (0) target = $region21
    $region20: #{tpu_custom_call.1} parent=1 // pred_region
      %s206 = ssub.s32 512, 512
      %207 = vsyncadd [#allocation4], %s206
      %s209 = sshll.u32 [#allocation5], 4
      %s210 = int_to_ptr.vmem [resolvable:$true] %s209
      %212 = dma.vmem_to_hbm [thread:$0]  %s210, 512, %s3, [#allocation4]
    $region21: #{tpu_custom_call.1} parent=1 // pred_fallthru
      _
    // Predicated region
    $region22: #{tpu_custom_call.1} parent=1 // pred_check
      _
    $region23: #{tpu_custom_call.1} parent=1 // pred_check_branch
      %214 = sbr.rel (0) target = $region25
    $region24: #{tpu_custom_call.1} parent=1 // pred_region
      %215 = dma.done [#allocation4], 512
    $region25: #{tpu_custom_call.1} parent=1 // pred_fallthru
      _
    %216 = vsyncpa [#allocation3], 1
    %217 = vsyncpa [#allocation4], 1

</llo_original>
